<compile_context>
chip_gen: v7x
topology: tpu7x:2x2x1
jax: 0.10.0
libtpu: 0.0.40
codegen_flags: <defaults>
</compile_context>

<pallas_src>
import jax
import jax.numpy as jnp
from jax.experimental import pallas as pl
from jax.experimental.pallas import tpu as pltpu

_LANE = 128
_SUBLANE = 8


def _round_up(x, m):
    return (x + m - 1) // m * m


def _caption_score_kernel(img_ref, wimg_ref, txtn_ref, out_ref, acc_ref):
    """One (batch-tile i, K-tile k) grid step of the caption reward.

    img_ref : (tm, tk)    f32   flattened image pixels (K-slice of F)
    wimg_ref: (tk, D)     bf16  image projection weights (K-slice of F)
    txtn_ref: (tm, D)     f32   pooled + projected + L2-normalized text (resident)
    out_ref : (tm, 128)   f32   reward broadcast across lanes (resident)
    acc_ref : (tm, D)     f32   VMEM accumulator for the image projection
    """
    k = pl.program_id(1)

    @pl.when(k == 0)
    def _init():
        acc_ref[...] = jnp.zeros_like(acc_ref)

    # MXU matmul: bf16 x bf16 operands (image cast in-kernel), f32 accumulation.
    acc_ref[...] += jnp.dot(img_ref[...].astype(jnp.bfloat16), wimg_ref[...],
                            preferred_element_type=jnp.float32)

    @pl.when(k == pl.num_programs(1) - 1)
    def _finalize():
        eps = jnp.float32(1e-6)
        img_proj = acc_ref[...]                          # (tm, D) f32
        txt_n = txtn_ref[...]                            # (tm, D) f32, pre-normalized
        dot = jnp.sum(img_proj * txt_n, axis=-1, keepdims=True)       # (tm, 1)
        sq = jnp.sum(img_proj * img_proj, axis=-1, keepdims=True)     # (tm, 1)
        reward = dot * jax.lax.rsqrt(sq + eps)                         # (tm, 1)
        # Lane-dense (unmasked) store: broadcast across the 128-lane axis;
        # the wrapper slices column 0.
        out_ref[...] = jnp.broadcast_to(reward, out_ref.shape)


def caption_reward(images, prompt_ids, params, *, tk=512):
    """Wrapper mimicking CaptionModelWrapper.forward(images, prompts).

    images     : (B, C, H, W) float32, NCHW like PyTorch
    prompt_ids : (B, S) int32 token ids
    params     : dict with 'embed_table' (V, Hdim), 'w_img' (C*H*W, D),
                 'w_txt' (Hdim, D)
    returns    : (B,) float32 caption reward
    """
    B, C, H, W = images.shape
    F = C * H * W
    D = params["w_img"].shape[1]
    eps = jnp.float32(1e-6)

    # Tile sizes. tk multiple of 128 (and of 256 when F allows — MXU friendly).
    tk = min(tk, _round_up(F, _LANE))
    tm = 128 if B >= 128 else _round_up(B, _SUBLANE)
    B_pad = _round_up(B, tm)
    F_pad = _round_up(F, tk)
    D_pad = _round_up(D, _LANE)

    # --- image branch operand: flatten (free reshape), pad only when needed ---
    img_flat = images.reshape(B, F).astype(jnp.float32)
    if B_pad != B or F_pad != F:
        img_flat = jnp.pad(img_flat, ((0, B_pad - B), (0, F_pad - F)))

    # --- weights: pre-cast to bf16 once (re-streamed for every batch tile) ---
    w_img_bf = params["w_img"].astype(jnp.bfloat16)
    if F_pad != F or D_pad != D:
        w_img_bf = jnp.pad(w_img_bf, ((0, F_pad - F), (0, D_pad - D)))

    # --- text branch folded outside the kernel (linearity of mean & matmul) ---
    w_comb = jnp.dot(params["embed_table"], params["w_txt"],
                     preferred_element_type=jnp.float32)               # (V, D)
    txt_proj = jnp.mean(jnp.take(w_comb, prompt_ids, axis=0), axis=1)  # (B, D)
    txt_n = txt_proj * jax.lax.rsqrt(
        jnp.sum(txt_proj * txt_proj, axis=-1, keepdims=True) + eps)    # (B, D)
    if B_pad != B or D_pad != D:
        txt_n = jnp.pad(txt_n, ((0, B_pad - B), (0, D_pad - D)))

    grid = (B_pad // tm, F_pad // tk)

    # Size the VMEM request to actual double-buffered tile needs (+2x margin),
    # leaving plenty of headroom on v7x's 64 MiB per-TensorCore VMEM.
    tile_bytes = (
        2 * tm * tk * 4          # img double-buffer (f32)
        + 2 * tk * D_pad * 2     # w_img double-buffer (bf16)
        + 2 * tm * D_pad * 4     # txt double-buffer (f32)
        + 2 * tm * _LANE * 4     # out double-buffer (f32)
        + tm * D_pad * 4         # f32 accumulator scratch
    )
    vmem_limit = int(min(max(2 * tile_bytes, 4 << 20), 48 << 20))

    out = pl.pallas_call(
        _caption_score_kernel,
        out_shape=jax.ShapeDtypeStruct((B_pad, _LANE), jnp.float32),
        grid=grid,
        in_specs=[
            pl.BlockSpec((tm, tk), lambda i, k: (i, k)),      # image K-slice
            pl.BlockSpec((tk, D_pad), lambda i, k: (k, 0)),   # w_img K-slice
            pl.BlockSpec((tm, D_pad), lambda i, k: (i, 0)),   # pooled/normed text
        ],
        out_specs=pl.BlockSpec((tm, _LANE), lambda i, k: (i, 0)),
        scratch_shapes=[pltpu.VMEM((tm, D_pad), jnp.float32)],
        compiler_params=pltpu.CompilerParams(
            dimension_semantics=("parallel", "arbitrary"),
            vmem_limit_bytes=vmem_limit,
        ),
    )(img_flat, w_img_bf, txt_n)

    return out[:B, 0]


def _reference_bf16(images, prompt_ids, params):
    """Reference mirroring the kernel numerics (bf16 MXU operands, f32 acc)."""
    B = images.shape[0]
    img_flat = images.reshape(B, -1).astype(jnp.bfloat16)
    w_img = params["w_img"].astype(jnp.bfloat16)
    img_proj = jnp.dot(img_flat, w_img, preferred_element_type=jnp.float32)
    w_comb = jnp.dot(params["embed_table"], params["w_txt"],
                     preferred_element_type=jnp.float32)
    txt_proj = jnp.mean(jnp.take(w_comb, prompt_ids, axis=0), axis=1)
    eps = jnp.float32(1e-6)
    img_n = img_proj * jax.lax.rsqrt(
        jnp.sum(img_proj ** 2, -1, keepdims=True) + eps)
    txt_n = txt_proj * jax.lax.rsqrt(
        jnp.sum(txt_proj ** 2, -1, keepdims=True) + eps)
    return jnp.sum(img_n * txt_n, axis=-1)


def _reference_f32(images, prompt_ids, params):
    """Full-precision reference of the original pipeline (loose sanity check)."""
    B = images.shape[0]
    img_flat = images.reshape(B, -1).astype(jnp.float32)
    img_proj = img_flat @ params["w_img"]
    txt_emb = jnp.take(params["embed_table"], prompt_ids, axis=0)
    txt_proj = jnp.mean(txt_emb, axis=1) @ params["w_txt"]
    eps = 1e-6
    img_n = img_proj / jnp.sqrt(jnp.sum(img_proj ** 2, -1, keepdims=True) + eps)
    txt_n = txt_proj / jnp.sqrt(jnp.sum(txt_proj ** 2, -1, keepdims=True) + eps)
    return jnp.sum(img_n * txt_n, axis=-1)


if __name__ == "__main__":
    # Small shapes consistent with the forward pass semantics.
    B, C, H, W = 2, 4, 16, 16          # images: NCHW
    S = 8                               # prompt sequence length
    Hdim = 32                           # text hidden dim
    D = 128                             # shared embedding dim (lane-friendly)
    V = 64                              # vocab size

    key = jax.random.PRNGKey(0)
    k_img, k_tok, k_emb, k_wi, k_wt = jax.random.split(key, 5)

    images = jax.random.normal(k_img, (B, C, H, W), dtype=jnp.float32)
    prompt_ids = jax.random.randint(k_tok, (B, S), 0, V, dtype=jnp.int32)

    # Deterministic synthetic parameters (shapes implied by the forward pass).
    params = {
        "embed_table": jax.random.normal(k_emb, (V, Hdim), jnp.float32) * 0.02,
        "w_img": jax.random.normal(k_wi, (C * H * W, D), jnp.float32)
        * (1.0 / jnp.sqrt(jnp.float32(C * H * W))),
        "w_txt": jax.random.normal(k_wt, (Hdim, D), jnp.float32)
        * (1.0 / jnp.sqrt(jnp.float32(Hdim))),
    }

    # TODO(synk): the original wrapper dispatches to an external pretrained BLIP
    # model (`load_model` / `.score`); here a synthetic ITC scoring head with
    # deterministic weights stands in for it (prompts are pre-tokenized ids).

    reward = caption_reward(images, prompt_ids, params)
    reward = jax.block_until_ready(reward)

    ref_bf16 = _reference_bf16(images, prompt_ids, params)
    ref_f32 = _reference_f32(images, prompt_ids, params)

    assert reward.shape == (B,)
    # Tight check against the reference with identical (bf16-operand) numerics.
    assert jnp.allclose(reward, ref_bf16, atol=1e-4, rtol=1e-4), (reward, ref_bf16)
    # Loose check against the full-f32 original pipeline (bf16 operand rounding).
    assert jnp.allclose(reward, ref_f32, atol=3e-2, rtol=3e-2), (reward, ref_f32)

    print("KERNEL_OK")
</pallas_src>

<mosaic_0001>
module attributes {stable_mosaic.version = 11 : i64} {
  func.func @_caption_score_kernel(%arg0: i32, %arg1: i32, %arg2: memref<8x512xf32, #tpu.memory_space<vmem>>, %arg3: memref<512x128xbf16, #tpu.memory_space<vmem>>, %arg4: memref<8x128xf32, #tpu.memory_space<vmem>>, %arg5: memref<8x128xf32, #tpu.memory_space<vmem>>, %arg6: memref<8x128xf32, #tpu.memory_space<vmem>>) attributes {dimension_semantics = [#tpu.dimension_semantics<parallel>, #tpu.dimension_semantics<arbitrary>], iteration_bounds = array<i64: 1, 2>, scalar_prefetch = 0 : i64, scratch_operands = 1 : i64, tpu.core_type = #tpu.core_type<tc>, window_params = [{transform_indices = @transform_0, window_bounds = array<i64: 8, 512>}, {transform_indices = @transform_1, window_bounds = array<i64: 512, 128>}, {transform_indices = @transform_2, window_bounds = array<i64: 8, 128>}, {transform_indices = @transform_3, window_bounds = array<i64: 8, 128>}]} {
    %c0_i32 = arith.constant 0 : i32
    %0 = arith.cmpi eq, %arg1, %c0_i32 : i32
    %1 = arith.extui %0 : i1 to i32
    %c0_i32_0 = arith.constant 0 : i32
    %2 = arith.cmpi ne, %1, %c0_i32_0 : i32
    scf.if %2 {
      %cst_9 = arith.constant 0.000000e+00 : f32
      %13 = vector.broadcast %cst_9 : f32 to vector<8x128xf32>
      %c0_10 = arith.constant 0 : index
      %c0_11 = arith.constant 0 : index
      %14 = vector.load %arg6[%c0_10, %c0_11] : memref<8x128xf32, #tpu.memory_space<vmem>>, vector<8x128xf32>
      tpu.vector_store %arg6[%c0_10, %c0_11], %13 {strides = array<i32>} : memref<8x128xf32, #tpu.memory_space<vmem>>, vector<8x128xf32>,
    } else {
    }
    %c0 = arith.constant 0 : index
    %c0_1 = arith.constant 0 : index
    %3 = vector.load %arg6[%c0, %c0_1] : memref<8x128xf32, #tpu.memory_space<vmem>>, vector<8x128xf32>
    %c0_2 = arith.constant 0 : index
    %c0_3 = arith.constant 0 : index
    %4 = vector.load %arg2[%c0_2, %c0_3] : memref<8x512xf32, #tpu.memory_space<vmem>>, vector<8x512xf32>
    %5 = arith.truncf %4 : vector<8x512xf32> to vector<8x512xbf16>
    %c0_4 = arith.constant 0 : index
    %c0_5 = arith.constant 0 : index
    %6 = vector.load %arg3[%c0_4, %c0_5] : memref<512x128xbf16, #tpu.memory_space<vmem>>, vector<512x128xbf16>
    %cst = arith.constant dense<0.000000e+00> : vector<8x128xf32>
    %7 = tpu.matmul %5, %6, %cst {dimension_numbers = #tpu.dot_dimension_numbers<[1], [0], [0], [1], [0, 0, 1, 1], [], []>} : vector<8x512xbf16>, vector<512x128xbf16>, vector<8x128xf32> -> vector<8x128xf32>
    %8 = arith.addf %3, %7 : vector<8x128xf32>
    %c0_6 = arith.constant 0 : index
    %c0_7 = arith.constant 0 : index
    %9 = vector.load %arg6[%c0_6, %c0_7] : memref<8x128xf32, #tpu.memory_space<vmem>>, vector<8x128xf32>
    tpu.vector_store %arg6[%c0_6, %c0_7], %8 {strides = array<i32>} : memref<8x128xf32, #tpu.memory_space<vmem>>, vector<8x128xf32>,
    %c1_i32 = arith.constant 1 : i32
    %10 = arith.cmpi eq, %arg1, %c1_i32 : i32
    %11 = arith.extui %10 : i1 to i32
    %c0_i32_8 = arith.constant 0 : i32
    %12 = arith.cmpi ne, %11, %c0_i32_8 : i32
    scf.if %12 {
      %c0_9 = arith.constant 0 : index
      %c0_10 = arith.constant 0 : index
      %13 = vector.load %arg6[%c0_9, %c0_10] : memref<8x128xf32, #tpu.memory_space<vmem>>, vector<8x128xf32>
      %c0_11 = arith.constant 0 : index
      %c0_12 = arith.constant 0 : index
      %14 = vector.load %arg4[%c0_11, %c0_12] : memref<8x128xf32, #tpu.memory_space<vmem>>, vector<8x128xf32>
      %15 = arith.mulf %13, %14 : vector<8x128xf32>
      %cst_13 = arith.constant dense<0.000000e+00> : vector<8xf32>
      %16 = vector.multi_reduction <add>, %15, %cst_13 [1] : vector<8x128xf32> to vector<8xf32>
      %17 = vector.shape_cast %16 : vector<8xf32> to vector<8x1xf32>
      %18 = arith.mulf %13, %13 : vector<8x128xf32>
      %cst_14 = arith.constant dense<0.000000e+00> : vector<8xf32>
      %19 = vector.multi_reduction <add>, %18, %cst_14 [1] : vector<8x128xf32> to vector<8xf32>
      %20 = vector.shape_cast %19 : vector<8xf32> to vector<8x1xf32>
      %cst_15 = arith.constant 9.99999997E-7 : f32
      %21 = vector.broadcast %cst_15 : f32 to vector<8x1xf32>
      %22 = arith.addf %20, %21 : vector<8x1xf32>
      %23 = math.rsqrt %22 : vector<8x1xf32>
      %24 = arith.mulf %17, %23 : vector<8x1xf32>
      %25 = vector.shape_cast %24 : vector<8x1xf32> to vector<8x1xf32>
      %26 = vector.broadcast %25 : vector<8x1xf32> to vector<8x128xf32>
      %c0_16 = arith.constant 0 : index
      %c0_17 = arith.constant 0 : index
      %27 = vector.load %arg5[%c0_16, %c0_17] : memref<8x128xf32, #tpu.memory_space<vmem>>, vector<8x128xf32>
      tpu.vector_store %arg5[%c0_16, %c0_17], %26 {strides = array<i32>} : memref<8x128xf32, #tpu.memory_space<vmem>>, vector<8x128xf32>,
    } else {
    }
    return
  }
  func.func @transform_0(%arg0: i32, %arg1: i32) -> (i32, i32) {
    %c0_i32 = arith.constant 0 : i32
    return %arg0, %arg1 : i32, i32
  }
  func.func @transform_1(%arg0: i32, %arg1: i32) -> (i32, i32) {
    %c0_i32 = arith.constant 0 : i32
    %c0_i32_0 = arith.constant 0 : i32
    return %arg1, %c0_i32 : i32, i32
  }
  func.func @transform_2(%arg0: i32, %arg1: i32) -> (i32, i32) {
    %c0_i32 = arith.constant 0 : i32
    %c0_i32_0 = arith.constant 0 : i32
    return %arg0, %c0_i32 : i32, i32
  }
  func.func @transform_3(%arg0: i32, %arg1: i32) -> (i32, i32) {
    %c0_i32 = arith.constant 0 : i32
    %c0_i32_0 = arith.constant 0 : i32
    return %arg0, %c0_i32 : i32, i32
  }
}

</mosaic_0001>

<llo_original>
// kernel: tpu_custom_call.1
$region0: #{tpu_custom_call.1}
  #allocation0 [shape = 'u32[]', space=smem, size = 0x4, offset = 0x4, fixed_abs, tag = 'smem constant byte address 0x4 - core index']
  #allocation1 [shape = 'u32[144,128]{1,0:T(1,128)}', space=vmem, size = 0x12000, scoped, tag = 'internal scratch']
  #allocation2 [shape = 'f32[8,128]{1,0:T(8,128)}', space=vmem, size = 0x1000, scoped, tag = 'scratch operand']
  %s0 = inlined_call_operand.hbm [shape: f32[8,1024], index: 0, kind: input, shape index: {}]
  %s1 = inlined_call_operand.hbm [shape: bf16[1024,128], index: 1, kind: input, shape index: {}]
  %s2 = inlined_call_operand.hbm [shape: f32[8,128], index: 2, kind: input, shape index: {}]
  %s3 = inlined_call_operand.hbm [shape: f32[8,128], index: 3, kind: output, shape index: {}]
  %s4 = sld [smem:[#allocation0]]
  $region65: #{tpu_custom_call.1} parent=0
    _
  %s6 = ssub.s32 1, %s4
  %s7 = scalar_select 0, %s6, %s4
  $region1: #{tpu_custom_call.1} parent=0
    #allocation3 [shape = 'u8[32768]{0}', space=vmem, size = 0x8000, scoped, tag = 'input window, operand 0']
    #allocation4 [shape = 's32[2]{0}', space=sflag, size = 0x8, scoped, tag = 'scoped memory for tpu_custom_call.1']
    #allocation5 [shape = 's32[2]{0}', space=sflag, size = 0x8, scoped, tag = 'scoped memory for tpu_custom_call.1']
    #allocation6 [shape = 'u8[262144]{0}', space=vmem, size = 0x40000, scoped, tag = 'input window, operand 1']
    #allocation7 [shape = 's32[2]{0}', space=sflag, size = 0x8, scoped, tag = 'scoped memory for tpu_custom_call.1']
    #allocation8 [shape = 'u8[4096]{0}', space=vmem, size = 0x1000, scoped, tag = 'input window, operand 2, single buffered']
    #allocation9 [shape = 'u8[4096]{0}', space=vmem, size = 0x1000, scoped, tag = 'output window, operand 0, single buffered']
    %8 = vsyncpa [#allocation4], 0
    %s9 = scalar_lea.sflag [#allocation4], 1
    %10 = vsyncpa %s9, 0
    %11 = vsyncpa [#allocation7], 0
    %s12 = scalar_lea.sflag [#allocation7], 1
    %13 = vsyncpa %s12, 0
    %14 = vsyncpa [#allocation5], 0
    loop: start=0, step=1, limit=4
    $region2: #{tpu_custom_call.1} parent=1 // loop_pre_header
      _
    $region3: #{tpu_custom_call.1} parent=1 // loop_header
      %s16 = sphi 0, %s20
      %p17 = scmp.ge.s32.totalorder %s16, 4
      %s23 = sphi 0, %s35
      %s24 = sphi 0, %s31
      %s25 = sphi 0, %s23
      %s26 = sphi 0, %s24
      %s27 = sphi 0, %s25
      %s28 = sphi 0, %s26
      %s40 = sphi 0, %s42
      %s43 = sphi 0, %s40
      %s44 = sphi 0, %s43
      %s60 = sphi 0, %s44
      %s66 = sphi 0, %s68
      %s69 = sphi 0, %s66
      %s70 = sphi 0, %s69
      %s86 = sphi 0, %s70
      %s92 = sphi 0, %s94
      %s95 = sphi 0, %s92
      %s96 = sphi 0, %s95
      %s112 = sphi 0, %s96
      %s118 = sphi 0, %s120
      %s121 = sphi 0, %s118
      %s122 = sphi 0, %s121
      %s138 = sphi 0, %s122
    $region4: #{tpu_custom_call.1} parent=1 // loop_header_branch
      %19 = sbr.rel (%p17) target = $region8
    $region5: #{tpu_custom_call.1} parent=1 // loop_body
      %s21 = ssub.s32 %s16, 1
      %s22 = ssub.s32 %s16, 2
      %s29 = sadd.s32 1, %s24
      %p30 = scmp.ge.s32.totalorder %s29, 2
      %s31 = scalar_select %p30, 0, %s29
      %s32 = sadd.s32 1, %s23
      %s33 = scalar_select %p30, %s32, %s23
      %p34 = scmp.ge.s32.totalorder %s33, 1
      %s35 = scalar_select %p34, 0, %s33
      %s36 = ssub.s32 %s23, %s35
      %s37 = ssub.s32 %s24, %s31
      %s38 = sor.u32 %s36, %s37
      %p39 = scmp.eq.s32.totalorder %s38, 0
      %s41 = sadd.s32 %s40, 1
      %s42 = scalar_select %p39, %s40, %s41
      %p45 = pneg %p39
      %p46 = scmp.eq.s32.totalorder %s16, 1
      %p47 = por %p45, %p46
      %p48 = scmp.ne.s32.totalorder %s40, %s43
      %p49 = scmp.eq.s32.totalorder %s16, 0
      %p50 = por %p48, %p49
      %p51 = scmp.ne.s32.totalorder %s40, %s43
      %p52 = scmp.eq.s32.totalorder %s21, 1
      %p53 = por %p51, %p52
      %p54 = scmp.ne.s32.totalorder %s43, %s44
      %p55 = scmp.eq.s32.totalorder %s21, 0
      %p56 = por %p54, %p55
      %p57 = scmp.ne.s32.totalorder %s43, %s44
      %p58 = scmp.eq.s32.totalorder %s22, 1
      %p59 = por %p57, %p58
      %p61 = scmp.ne.s32.totalorder %s44, %s60
      %p62 = scmp.eq.s32.totalorder %s22, 0
      %p63 = por %p61, %p62
      %s64 = ssub.s32 %s24, %s31
      %p65 = scmp.eq.s32.totalorder %s64, 0
      %s67 = sadd.s32 %s66, 1
      %s68 = scalar_select %p65, %s66, %s67
      %p71 = pneg %p65
      %p72 = scmp.eq.s32.totalorder %s16, 1
      %p73 = por %p71, %p72
      %p74 = scmp.ne.s32.totalorder %s66, %s69
      %p75 = scmp.eq.s32.totalorder %s16, 0
      %p76 = por %p74, %p75
      %p77 = scmp.ne.s32.totalorder %s66, %s69
      %p78 = scmp.eq.s32.totalorder %s21, 1
      %p79 = por %p77, %p78
      %p80 = scmp.ne.s32.totalorder %s69, %s70
      %p81 = scmp.eq.s32.totalorder %s21, 0
      %p82 = por %p80, %p81
      %p83 = scmp.ne.s32.totalorder %s69, %s70
      %p84 = scmp.eq.s32.totalorder %s22, 1
      %p85 = por %p83, %p84
      %p87 = scmp.ne.s32.totalorder %s70, %s86
      %p88 = scmp.eq.s32.totalorder %s22, 0
      %p89 = por %p87, %p88
      %s90 = ssub.s32 %s23, %s35
      %p91 = scmp.eq.s32.totalorder %s90, 0
      %s93 = sadd.s32 %s92, 1
      %s94 = scalar_select %p91, %s92, %s93
      %p97 = pneg %p91
      %p98 = scmp.eq.s32.totalorder %s16, 1
      %p99 = por %p97, %p98
      %p100 = scmp.ne.s32.totalorder %s92, %s95
      %p101 = scmp.eq.s32.totalorder %s16, 0
      %p102 = por %p100, %p101
      %p103 = scmp.ne.s32.totalorder %s92, %s95
      %p104 = scmp.eq.s32.totalorder %s21, 1
      %p105 = por %p103, %p104
      %p106 = scmp.ne.s32.totalorder %s95, %s96
      %p107 = scmp.eq.s32.totalorder %s21, 0
      %p108 = por %p106, %p107
      %p109 = scmp.ne.s32.totalorder %s95, %s96
      %p110 = scmp.eq.s32.totalorder %s22, 1
      %p111 = por %p109, %p110
      %p113 = scmp.ne.s32.totalorder %s96, %s112
      %p114 = scmp.eq.s32.totalorder %s22, 0
      %p115 = por %p113, %p114
      %s116 = ssub.s32 %s23, %s35
      %p117 = scmp.eq.s32.totalorder %s116, 0
      %s119 = sadd.s32 %s118, 1
      %s120 = scalar_select %p117, %s118, %s119
      %p123 = pneg %p117
      %p124 = scmp.eq.s32.totalorder %s16, 1
      %p125 = por %p123, %p124
      %p126 = scmp.ne.s32.totalorder %s118, %s121
      %p127 = scmp.eq.s32.totalorder %s16, 0
      %p128 = por %p126, %p127
      %p129 = scmp.ne.s32.totalorder %s118, %s121
      %p130 = scmp.eq.s32.totalorder %s21, 1
      %p131 = por %p129, %p130
      %p132 = scmp.ne.s32.totalorder %s121, %s122
      %p133 = scmp.eq.s32.totalorder %s21, 0
      %p134 = por %p132, %p133
      %p135 = scmp.ne.s32.totalorder %s121, %s122
      %p136 = scmp.eq.s32.totalorder %s22, 1
      %p137 = por %p135, %p136
      %p139 = scmp.ne.s32.totalorder %s122, %s138
      %p140 = scmp.eq.s32.totalorder %s22, 0
      %p141 = por %p139, %p140
      %p142 = scmp.le.s32.totalorder 1, %s16
      %p143 = scmp.lt.s32.totalorder %s16, 3
      %p144 = pnand %p142, %p143
      %p145 = pneg %p144
      // Predicated region
      $region9: #{tpu_custom_call.1} parent=5 // pred_check
        _
      $region10: #{tpu_custom_call.1} parent=5 // pred_check_branch
        %147 = sbr.rel (%p144) target = $region12
      $region11: #{tpu_custom_call.1} parent=5 // pred_region
        %s148 = ssub.s32 %s16, 1
        // Predicated region
        $region13: #{tpu_custom_call.1} parent=11 // pred_check
          %p149 = pneg %p108
        $region14: #{tpu_custom_call.1} parent=11 // pred_check_branch
          %151 = sbr.rel (%p149) target = $region16
        $region15: #{tpu_custom_call.1} parent=11 // pred_region
          %s153 = ssub.s32 128, 128
          %154 = vsyncadd [#allocation7], %s153
          %s155 = smul.addr %s25, 128
          %s156 = scalar_lea.hbm %s2, %s155
          %s158 = sshll.u32 [#allocation8], 4
          %s159 = int_to_ptr.vmem [resolvable:$true] %s158
          %161 = dma.hbm_to_vmem [thread:$0]  %s156, 128, %s159, [#allocation7]
        $region16: #{tpu_custom_call.1} parent=11 // pred_fallthru
          _
      $region12: #{tpu_custom_call.1} parent=5 // pred_fallthru
        _
      %p162 = scmp.lt.s32.totalorder %s16, 2
      // Predicated region
      $region17: #{tpu_custom_call.1} parent=5 // pred_check
        %p163 = pneg %p162
      $region18: #{tpu_custom_call.1} parent=5 // pred_check_branch
        %165 = sbr.rel (%p163) target = $region20
      $region19: #{tpu_custom_call.1} parent=5 // pred_region
        // Predicated region
        $region21: #{tpu_custom_call.1} parent=19 // pred_check
          %p166 = pneg %p50
        $region22: #{tpu_custom_call.1} parent=19 // pred_check_branch
          %168 = sbr.rel (%p166) target = $region24
        $region23: #{tpu_custom_call.1} parent=19 // pred_region
          %s169 = sand.u32 %s40, 1
          %s170 = scalar_lea.sflag [#allocation4], %s169
          %s171 = sand.u32 %s40, 1
          %s172 = smul.addr %s171, 32
          %s173 = scalar_lea.vmem [#allocation3], %s172
          %s174 = smul.u32 4, %s24
          %s176 = ssub.s32 512, 512
          %177 = vsyncadd %s170, %s176
          %s178 = smul.addr %s23, 8
          %s179 = sadd.s32 %s174, %s178
          %s180 = smul.addr %s179, 128
          %s181 = scalar_lea.hbm %s0, %s180
          %s183 = sshll.u32 %s173, 4
          %s184 = int_to_ptr.vmem [resolvable:$true] %s183
          %186 = dma.hbm_to_vmem [thread:$0]  %s181, 512, %s184, %s170
        $region24: #{tpu_custom_call.1} parent=19 // pred_fallthru
          _
        // Predicated region
        $region25: #{tpu_custom_call.1} parent=19 // pred_check
          %p187 = pneg %p76
        $region26: #{tpu_custom_call.1} parent=19 // pred_check_branch
          %189 = sbr.rel (%p187) target = $region28
        $region27: #{tpu_custom_call.1} parent=19 // pred_region
          %s190 = sand.u32 %s16, 1
          %s191 = scalar_lea.sflag [#allocation7], %s190
          %s192 = sand.u32 %s66, 1
          %s193 = smul.addr %s192, 256
          %s194 = scalar_lea.vmem [#allocation6], %s193
          %s195 = smul.u32 64, %s24
          %s197 = ssub.s32 4096, 4096
          %198 = vsyncadd %s191, %s197
          %s199 = smul.addr %s195, 64
          %s200 = scalar_lea.hbm %s1, %s199
          %s201 = sshll.u32 %s194, 4
          %s202 = int_to_ptr.vmem [resolvable:$true] %s201
          %207 = dma.hbm_to_vmem [thread:$0]  %s200, 4096, %s202, %s191, 64, 64, 4
        $region28: #{tpu_custom_call.1} parent=19 // pred_fallthru
          _
      $region20: #{tpu_custom_call.1} parent=5 // pred_fallthru
        _
      %p208 = scmp.le.s32.totalorder 1, %s16
      %p209 = scmp.lt.s32.totalorder %s16, 3
      %p210 = pnand %p208, %p209
      %p211 = pneg %p210
      // Predicated region
      $region29: #{tpu_custom_call.1} parent=5 // pred_check
        _
      $region30: #{tpu_custom_call.1} parent=5 // pred_check_branch
        %213 = sbr.rel (%p210) target = $region32
      $region31: #{tpu_custom_call.1} parent=5 // pred_region
        %s214 = ssub.s32 %s16, 1
        %s215 = sand.u32 %s43, 1
        %s216 = scalar_lea.sflag [#allocation4], %s215
        %s217 = sand.u32 %s43, 1
        %s218 = smul.addr %s217, 32
        %s219 = scalar_lea.vmem [#allocation3], %s218
        // Predicated region
        $region33: #{tpu_custom_call.1} parent=31 // pred_check
          %p220 = pneg %p56
        $region34: #{tpu_custom_call.1} parent=31 // pred_check_branch
          %222 = sbr.rel (%p220) target = $region36
        $region35: #{tpu_custom_call.1} parent=31 // pred_region
          %223 = dma.done %s216, 512
        $region36: #{tpu_custom_call.1} parent=31 // pred_fallthru
          _
        %s224 = sand.u32 %s21, 1
        %s225 = scalar_lea.sflag [#allocation7], %s224
        %s226 = sand.u32 %s69, 1
        %s227 = smul.addr %s226, 256
        %s228 = scalar_lea.vmem [#allocation6], %s227
        // Predicated region
        $region37: #{tpu_custom_call.1} parent=31 // pred_check
          %p229 = pneg %p82
        $region38: #{tpu_custom_call.1} parent=31 // pred_check_branch
          %231 = sbr.rel (%p229) target = $region40
        $region39: #{tpu_custom_call.1} parent=31 // pred_region
          %232 = dma.done %s225, 4096
        $region40: #{tpu_custom_call.1} parent=31 // pred_fallthru
          _
        // Predicated region
        $region41: #{tpu_custom_call.1} parent=31 // pred_check
          %p233 = pneg %p108
        $region42: #{tpu_custom_call.1} parent=31 // pred_check_branch
          %235 = sbr.rel (%p233) target = $region44
        $region43: #{tpu_custom_call.1} parent=31 // pred_region
          %236 = dma.done [#allocation7], 128
        $region44: #{tpu_custom_call.1} parent=31 // pred_fallthru
          _
        %s237 = sand.u32 %s43, 1
        %s238 = scalar_lea.sflag [#allocation4], %s237
        %s239 = sand.u32 %s43, 1
        %s240 = smul.addr %s239, 32
        %s241 = scalar_lea.vmem [#allocation3], %s240
        %p242 = pneg %p56
        %p243 = pneg %p53
        %s244 = sand.u32 %s21, 1
        %s245 = scalar_lea.sflag [#allocation7], %s244
        %s246 = sand.u32 %s69, 1
        %s247 = smul.addr %s246, 256
        %s248 = scalar_lea.vmem [#allocation6], %s247
        %p249 = pneg %p82
        %p250 = pneg %p79
        %p251 = pneg %p108
        %p252 = pneg %p105
        %p253 = pneg %p134
        %p254 = pneg %p131
        %s255 = smul.u32 4, %s26
        %s256 = smul.u32 64, %s26
        %p258 = scmp.eq.s32.totalorder %s26, 0
        // Predicated region
        $region45: #{tpu_custom_call.1} parent=31 // pred_check
          %p259 = pneg %p258
        $region46: #{tpu_custom_call.1} parent=31 // pred_check_branch
          %261 = sbr.rel (%p259) target = $region48
        $region47: #{tpu_custom_call.1} parent=31 // pred_region
          %262 = vst [vmem:[#allocation2] sm:$0xff] 0.0
        $region48: #{tpu_custom_call.1} parent=31 // pred_fallthru
          _
        %v263 = vld [vmem:[#allocation2] sm:$0xff]
        %v264 = vld [vmem:[%s219] sm:$0xff]
        %v265 = vld [vmem:[%s219 + $0x8] sm:$0xff]
        %v266 = vld [vmem:[%s219 + $0x10] sm:$0xff]
        %v267 = vld [vmem:[%s219 + $0x18] sm:$0xff]
        %v268 = vpack.c.bf16 %v264, %v264
        %v269 = vpack.c.bf16 %v265, %v265
        %v270 = vpack.c.bf16 %v266, %v266
        %v271 = vpack.c.bf16 %v267, %v267
        %v272 = vld [vmem:[%s228] sm:$0xf]
        %v273 = vld [vmem:[%s228 + $0x4] sm:$0xf]
        %v274 = vld [vmem:[%s228 + $0x8] sm:$0xf]
        %v275 = vld [vmem:[%s228 + $0xc] sm:$0xf]
        %v276 = vld [vmem:[%s228 + $0x10] sm:$0xf]
        %v277 = vld [vmem:[%s228 + $0x14] sm:$0xf]
        %v278 = vld [vmem:[%s228 + $0x18] sm:$0xf]
        %v279 = vld [vmem:[%s228 + $0x1c] sm:$0xf]
        %v280 = vld [vmem:[%s228 + $0x20] sm:$0xf]
        %v281 = vld [vmem:[%s228 + $0x24] sm:$0xf]
        %v282 = vld [vmem:[%s228 + $0x28] sm:$0xf]
        %v283 = vld [vmem:[%s228 + $0x2c] sm:$0xf]
        %v284 = vld [vmem:[%s228 + $0x30] sm:$0xf]
        %v285 = vld [vmem:[%s228 + $0x34] sm:$0xf]
        %v286 = vld [vmem:[%s228 + $0x38] sm:$0xf]
        %v287 = vld [vmem:[%s228 + $0x3c] sm:$0xf]
        %v288 = vld [vmem:[%s228 + $0x40] sm:$0xf]
        %v289 = vld [vmem:[%s228 + $0x44] sm:$0xf]
        %v290 = vld [vmem:[%s228 + $0x48] sm:$0xf]
        %v291 = vld [vmem:[%s228 + $0x4c] sm:$0xf]
        %v292 = vld [vmem:[%s228 + $0x50] sm:$0xf]
        %v293 = vld [vmem:[%s228 + $0x54] sm:$0xf]
        %v294 = vld [vmem:[%s228 + $0x58] sm:$0xf]
        %v295 = vld [vmem:[%s228 + $0x5c] sm:$0xf]
        %v296 = vld [vmem:[%s228 + $0x60] sm:$0xf]
        %v297 = vld [vmem:[%s228 + $0x64] sm:$0xf]
        %v298 = vld [vmem:[%s228 + $0x68] sm:$0xf]
        %v299 = vld [vmem:[%s228 + $0x6c] sm:$0xf]
        %v300 = vld [vmem:[%s228 + $0x70] sm:$0xf]
        %v301 = vld [vmem:[%s228 + $0x74] sm:$0xf]
        %v302 = vld [vmem:[%s228 + $0x78] sm:$0xf]
        %v303 = vld [vmem:[%s228 + $0x7c] sm:$0xf]
        %v304 = vld [vmem:[%s228 + $0x80] sm:$0xf]
        %v305 = vld [vmem:[%s228 + $0x84] sm:$0xf]
        %v306 = vld [vmem:[%s228 + $0x88] sm:$0xf]
        %v307 = vld [vmem:[%s228 + $0x8c] sm:$0xf]
        %v308 = vld [vmem:[%s228 + $0x90] sm:$0xf]
        %v309 = vld [vmem:[%s228 + $0x94] sm:$0xf]
        %v310 = vld [vmem:[%s228 + $0x98] sm:$0xf]
        %v311 = vld [vmem:[%s228 + $0x9c] sm:$0xf]
        %v312 = vld [vmem:[%s228 + $0xa0] sm:$0xf]
        %v313 = vld [vmem:[%s228 + $0xa4] sm:$0xf]
        %v314 = vld [vmem:[%s228 + $0xa8] sm:$0xf]
        %v315 = vld [vmem:[%s228 + $0xac] sm:$0xf]
        %v316 = vld [vmem:[%s228 + $0xb0] sm:$0xf]
        %v317 = vld [vmem:[%s228 + $0xb4] sm:$0xf]
        %v318 = vld [vmem:[%s228 + $0xb8] sm:$0xf]
        %v319 = vld [vmem:[%s228 + $0xbc] sm:$0xf]
        %v320 = vld [vmem:[%s228 + $0xc0] sm:$0xf]
        %v321 = vld [vmem:[%s228 + $0xc4] sm:$0xf]
        %v322 = vld [vmem:[%s228 + $0xc8] sm:$0xf]
        %v323 = vld [vmem:[%s228 + $0xcc] sm:$0xf]
        %v324 = vld [vmem:[%s228 + $0xd0] sm:$0xf]
        %v325 = vld [vmem:[%s228 + $0xd4] sm:$0xf]
        %v326 = vld [vmem:[%s228 + $0xd8] sm:$0xf]
        %v327 = vld [vmem:[%s228 + $0xdc] sm:$0xf]
        %v328 = vld [vmem:[%s228 + $0xe0] sm:$0xf]
        %v329 = vld [vmem:[%s228 + $0xe4] sm:$0xf]
        %v330 = vld [vmem:[%s228 + $0xe8] sm:$0xf]
        %v331 = vld [vmem:[%s228 + $0xec] sm:$0xf]
        %v332 = vld [vmem:[%s228 + $0xf0] sm:$0xf]
        %v333 = vld [vmem:[%s228 + $0xf4] sm:$0xf]
        %v334 = vld [vmem:[%s228 + $0xf8] sm:$0xf]
        %v335 = vld [vmem:[%s228 + $0xfc] sm:$0xf]
        %v400 = vunpack.c.l.b16 %v272
        %v401 = vunpack.c.l.b16 %v273
        %v402 = vunpack.c.l.b16 %v274
        %v403 = vunpack.c.l.b16 %v275
        %v404 = vunpack.c.l.b16 %v276
        %v405 = vunpack.c.l.b16 %v277
        %v406 = vunpack.c.l.b16 %v278
        %v407 = vunpack.c.l.b16 %v279
        %v408 = vunpack.c.l.b16 %v280
        %v409 = vunpack.c.l.b16 %v281
        %v410 = vunpack.c.l.b16 %v282
        %v411 = vunpack.c.l.b16 %v283
        %v412 = vunpack.c.l.b16 %v284
        %v413 = vunpack.c.l.b16 %v285
        %v414 = vunpack.c.l.b16 %v286
        %v415 = vunpack.c.l.b16 %v287
        %v416 = vunpack.c.l.b16 %v288
        %v417 = vunpack.c.l.b16 %v289
        %v418 = vunpack.c.l.b16 %v290
        %v419 = vunpack.c.l.b16 %v291
        %v420 = vunpack.c.l.b16 %v292
        %v421 = vunpack.c.l.b16 %v293
        %v422 = vunpack.c.l.b16 %v294
        %v423 = vunpack.c.l.b16 %v295
        %v424 = vunpack.c.l.b16 %v296
        %v425 = vunpack.c.l.b16 %v297
        %v426 = vunpack.c.l.b16 %v298
        %v427 = vunpack.c.l.b16 %v299
        %v428 = vunpack.c.l.b16 %v300
        %v429 = vunpack.c.l.b16 %v301
        %v430 = vunpack.c.l.b16 %v302
        %v431 = vunpack.c.l.b16 %v303
        %v432 = vunpack.c.l.b16 %v304
        %v433 = vunpack.c.l.b16 %v305
        %v434 = vunpack.c.l.b16 %v306
        %v435 = vunpack.c.l.b16 %v307
        %v436 = vunpack.c.l.b16 %v308
        %v437 = vunpack.c.l.b16 %v309
        %v438 = vunpack.c.l.b16 %v310
        %v439 = vunpack.c.l.b16 %v311
        %v440 = vunpack.c.l.b16 %v312
        %v441 = vunpack.c.l.b16 %v313
        %v442 = vunpack.c.l.b16 %v314
        %v443 = vunpack.c.l.b16 %v315
        %v444 = vunpack.c.l.b16 %v316
        %v445 = vunpack.c.l.b16 %v317
        %v446 = vunpack.c.l.b16 %v318
        %v447 = vunpack.c.l.b16 %v319
        %v448 = vunpack.c.l.b16 %v320
        %v449 = vunpack.c.l.b16 %v321
        %v450 = vunpack.c.l.b16 %v322
        %v451 = vunpack.c.l.b16 %v323
        %v452 = vunpack.c.l.b16 %v324
        %v453 = vunpack.c.l.b16 %v325
        %v454 = vunpack.c.l.b16 %v326
        %v455 = vunpack.c.l.b16 %v327
        %v456 = vunpack.c.l.b16 %v328
        %v457 = vunpack.c.l.b16 %v329
        %v458 = vunpack.c.l.b16 %v330
        %v459 = vunpack.c.l.b16 %v331
        %v460 = vunpack.c.l.b16 %v332
        %v461 = vunpack.c.l.b16 %v333
        %v462 = vunpack.c.l.b16 %v334
        %v463 = vunpack.c.l.b16 %v335
        %v464 = vpack.c.b16 %v401, %v400
        %v465 = vpack.c.b16 %v403, %v402
        %v466 = vpack.c.b16 %v405, %v404
        %v467 = vpack.c.b16 %v407, %v406
        %v468 = vpack.c.b16 %v409, %v408
        %v469 = vpack.c.b16 %v411, %v410
        %v470 = vpack.c.b16 %v413, %v412
        %v471 = vpack.c.b16 %v415, %v414
        %v472 = vpack.c.b16 %v417, %v416
        %v473 = vpack.c.b16 %v419, %v418
        %v474 = vpack.c.b16 %v421, %v420
        %v475 = vpack.c.b16 %v423, %v422
        %v476 = vpack.c.b16 %v425, %v424
        %v477 = vpack.c.b16 %v427, %v426
        %v478 = vpack.c.b16 %v429, %v428
        %v479 = vpack.c.b16 %v431, %v430
        %v480 = vpack.c.b16 %v433, %v432
        %v481 = vpack.c.b16 %v435, %v434
        %v482 = vpack.c.b16 %v437, %v436
        %v483 = vpack.c.b16 %v439, %v438
        %v484 = vpack.c.b16 %v441, %v440
        %v485 = vpack.c.b16 %v443, %v442
        %v486 = vpack.c.b16 %v445, %v444
        %v487 = vpack.c.b16 %v447, %v446
        %v488 = vpack.c.b16 %v449, %v448
        %v489 = vpack.c.b16 %v451, %v450
        %v490 = vpack.c.b16 %v453, %v452
        %v491 = vpack.c.b16 %v455, %v454
        %v492 = vpack.c.b16 %v457, %v456
        %v493 = vpack.c.b16 %v459, %v458
        %v494 = vpack.c.b16 %v461, %v460
        %v495 = vpack.c.b16 %v463, %v462
        %528 = vmatprep.subr.bf16.mxu0 0
        %529 = vmatpush1.bf16.msra.mxu0 %v464
        %530 = vmatprep.subr.bf16.mxu0 0
        %531 = vmatpush1.bf16.msra.mxu0 %v465
        %532 = vmatprep.subr.bf16.mxu0 0
        %533 = vmatpush1.bf16.msra.mxu0 %v466
        %534 = vmatprep.subr.bf16.mxu0 0
        %535 = vmatpush1.bf16.msra.mxu0 %v467
        %536 = vmatprep.subr.bf16.mxu0 0
        %537 = vmatpush1.bf16.msra.mxu0 %v468
        %538 = vmatprep.subr.bf16.mxu0 0
        %539 = vmatpush1.bf16.msra.mxu0 %v469
        %540 = vmatprep.subr.bf16.mxu0 0
        %541 = vmatpush1.bf16.msra.mxu0 %v470
        %542 = vmatprep.subr.bf16.mxu0 0
        %543 = vmatpush1.bf16.msra.mxu0 %v471
        %544 = vmatprep.subr.bf16.mxu0 0
        %545 = vmatpush1.bf16.msra.mxu0 %v472
        %546 = vmatprep.subr.bf16.mxu0 0
        %547 = vmatpush1.bf16.msra.mxu0 %v473
        %548 = vmatprep.subr.bf16.mxu0 0
        %549 = vmatpush1.bf16.msra.mxu0 %v474
        %550 = vmatprep.subr.bf16.mxu0 0
        %551 = vmatpush1.bf16.msra.mxu0 %v475
        %552 = vmatprep.subr.bf16.mxu0 0
        %553 = vmatpush1.bf16.msra.mxu0 %v476
        %554 = vmatprep.subr.bf16.mxu0 0
        %555 = vmatpush1.bf16.msra.mxu0 %v477
        %556 = vmatprep.subr.bf16.mxu0 0
        %557 = vmatpush1.bf16.msra.mxu0 %v478
        %558 = vmatprep.subr.bf16.mxu0 0
        %559 = vmatpush1.bf16.msra.mxu0 %v479
        %560 = vmatprep.mubr.bf16.mxu0 %v269
        %561 = vmatmul.mubr.bf16.gmra.mrb[0].mxu0 %v268
        %v562 = vpop.f32.mrb[0].mxu0
        %v563 = vadd.f32 0.0, %v562
        %v564 = vpop.f32.mrb[0].mxu0
        %v565 = vpop.f32.mrb[0].mxu0
        %v566 = vpop.f32.mrb[0].mxu0
        %567 = vdwg.mxu0
        %568 = vmatprep.subr.bf16.mxu0 0
        %569 = vmatpush1.bf16.msra.mxu0 %v480
        %570 = vmatprep.subr.bf16.mxu0 0
        %571 = vmatpush1.bf16.msra.mxu0 %v481
        %572 = vmatprep.subr.bf16.mxu0 0
        %573 = vmatpush1.bf16.msra.mxu0 %v482
        %574 = vmatprep.subr.bf16.mxu0 0
        %575 = vmatpush1.bf16.msra.mxu0 %v483
        %576 = vmatprep.subr.bf16.mxu0 0
        %577 = vmatpush1.bf16.msra.mxu0 %v484
        %578 = vmatprep.subr.bf16.mxu0 0
        %579 = vmatpush1.bf16.msra.mxu0 %v485
        %580 = vmatprep.subr.bf16.mxu0 0
        %581 = vmatpush1.bf16.msra.mxu0 %v486
        %582 = vmatprep.subr.bf16.mxu0 0
        %583 = vmatpush1.bf16.msra.mxu0 %v487
        %584 = vmatprep.subr.bf16.mxu0 0
        %585 = vmatpush1.bf16.msra.mxu0 %v488
        %586 = vmatprep.subr.bf16.mxu0 0
        %587 = vmatpush1.bf16.msra.mxu0 %v489
        %588 = vmatprep.subr.bf16.mxu0 0
        %589 = vmatpush1.bf16.msra.mxu0 %v490
        %590 = vmatprep.subr.bf16.mxu0 0
        %591 = vmatpush1.bf16.msra.mxu0 %v491
        %592 = vmatprep.subr.bf16.mxu0 0
        %593 = vmatpush1.bf16.msra.mxu0 %v492
        %594 = vmatprep.subr.bf16.mxu0 0
        %595 = vmatpush1.bf16.msra.mxu0 %v493
        %596 = vmatprep.subr.bf16.mxu0 0
        %597 = vmatpush1.bf16.msra.mxu0 %v494
        %598 = vmatprep.subr.bf16.mxu0 0
        %599 = vmatpush1.bf16.msra.mxu0 %v495
        %600 = vmatprep.mubr.bf16.mxu0 %v271
        %601 = vmatmul.mubr.bf16.gmra.mrb[0].mxu0 %v270
        %v602 = vpop.f32.mrb[0].mxu0
        %v603 = vadd.f32 %v563, %v602
        %v604 = vpop.f32.mrb[0].mxu0
        %v605 = vpop.f32.mrb[0].mxu0
        %v606 = vpop.f32.mrb[0].mxu0
        %607 = vdwg.mxu0
        %v608 = vadd.f32 %v263, %v603
        %609 = vst [vmem:[#allocation2] sm:$0xff] %v608
        %p610 = scmp.eq.s32.totalorder %s26, 1
        // Predicated region
        $region49: #{tpu_custom_call.1} parent=31 // pred_check
          %p611 = pneg %p610
        $region50: #{tpu_custom_call.1} parent=31 // pred_check_branch
          %613 = sbr.rel (%p611) target = $region52
        $region51: #{tpu_custom_call.1} parent=31 // pred_region
          %v614 = vld [vmem:[#allocation2] sm:$0xff]
          %v615 = vld [vmem:[#allocation8] sm:$0xff]
          %v616 = vmul.f32 %v614, %v615
          %617 = vadd.xlane.f32.xlu0 %v616
          %v618 = vpop.xlane.xlu0 %617
          %v619 = vmul.f32 %v614, %v614
          %620 = vadd.xlane.f32.xlu0 %v619
          %v621 = vpop.xlane.xlu0 %620
          %v622 = vadd.f32 %v621, 1e-06
          %v623 = vrsqrt.pop %v622
          %v624 = vmul.f32 %v618, %v623
          %625 = vst [vmem:[#allocation9] sm:$0xff] %v624
        $region52: #{tpu_custom_call.1} parent=31 // pred_fallthru
          _
        // Predicated region
        $region53: #{tpu_custom_call.1} parent=31 // pred_check
          %p626 = pneg %p131
        $region54: #{tpu_custom_call.1} parent=31 // pred_check_branch
          %628 = sbr.rel (%p626) target = $region56
        $region55: #{tpu_custom_call.1} parent=31 // pred_region
          %s630 = ssub.s32 128, 128
          %631 = vsyncadd [#allocation5], %s630
          %s632 = smul.addr %s25, 128
          %s633 = scalar_lea.hbm %s3, %s632
          %s635 = sshll.u32 [#allocation9], 4
          %s636 = int_to_ptr.vmem [resolvable:$true] %s635
          %638 = dma.vmem_to_hbm [thread:$0]  %s636, 128, %s633, [#allocation5]
        $region56: #{tpu_custom_call.1} parent=31 // pred_fallthru
          _
        // Predicated region
        $region57: #{tpu_custom_call.1} parent=31 // pred_check
          %p639 = pneg %p131
        $region58: #{tpu_custom_call.1} parent=31 // pred_check_branch
          %641 = sbr.rel (%p639) target = $region60
        $region59: #{tpu_custom_call.1} parent=31 // pred_region
          %642 = dma.done [#allocation5], 128
        $region60: #{tpu_custom_call.1} parent=31 // pred_fallthru
          _
      $region32: #{tpu_custom_call.1} parent=5 // pred_fallthru
        _
      %p643 = scmp.le.s32.totalorder 2, %s16
      // Predicated region
      $region61: #{tpu_custom_call.1} parent=5 // pred_check
        %p644 = pneg %p643
      $region62: #{tpu_custom_call.1} parent=5 // pred_check_branch
        %646 = sbr.rel (%p644) target = $region64
      $region63: #{tpu_custom_call.1} parent=5 // pred_region
        %s647 = ssub.s32 %s16, 2
      $region64: #{tpu_custom_call.1} parent=5 // pred_fallthru
        _
    $region6: #{tpu_custom_call.1} parent=1 // loop_footer
      %s20 = sadd.s32 1, %s16
    $region7: #{tpu_custom_call.1} parent=1 // loop_footer_branch
      %15 = sbr.rel target = $region3
    $region8: #{tpu_custom_call.1} parent=1 // loop_exit
      _
    %648 = vsyncpa [#allocation4], 1
    %s649 = scalar_lea.sflag [#allocation4], 1
    %650 = vsyncpa %s649, 1
    %651 = vsyncpa [#allocation7], 1
    %s652 = scalar_lea.sflag [#allocation7], 1
    %653 = vsyncpa %s652, 1
    %654 = vsyncpa [#allocation5], 1
    %s655 = scalar_lea.sflag [#allocation5], 1
    %656 = vsyncpa %s655, 1

</llo_original>
